<compile_context>
chip_gen: v6e
topology: v6e:2x2x1
jax: 0.10.0
libtpu: 0.0.40
codegen_flags: <defaults>
</compile_context>

<pallas_src>
import functools

import jax
import jax.numpy as jnp
from jax import lax
from jax.experimental import pallas as pl
from jax.experimental.pallas import tpu as pltpu


def _mhsa_kernel(x_ref, ln_w_ref, ln_b_ref, w_in_ref, b_in_ref,
                 wo_ref, bo_ref, o_ref, *, num_heads):
    """LayerNorm + MHSA for one batch element (one grid step)."""
    _, S, E = x_ref.shape
    H = num_heads
    D = E // H
    f32 = jnp.float32

    x = x_ref[0].astype(f32)                                       # (S, E)

    # ---- LayerNorm over E (eps = 1e-5, elementwise affine) ----
    mean = jnp.mean(x, axis=-1, keepdims=True)
    var = jnp.mean(jnp.square(x - mean), axis=-1, keepdims=True)
    xn = (x - mean) * lax.rsqrt(var + 1e-5)
    xn = xn * ln_w_ref[...].astype(f32) + ln_b_ref[...].astype(f32)

    # ---- Fused QKV: single lane-dense matmul (S, E) @ (E, 3E) + bias ----
    # TODO(synk): on v6e/v7x cast the matmul operands to bf16 (keep f32
    # accumulation) for MXU peak; kept f32 here to hold the 2e-4 tolerance.
    qkv = jnp.dot(xn, w_in_ref[...].astype(f32),
                  preferred_element_type=f32) + b_in_ref[...].astype(f32)

    # ---- Split heads with static lane slices (no reshape/transpose) ----
    def heads(base):
        cols = qkv[:, base:base + E]                               # (S, E)
        return jnp.stack([cols[:, h * D:(h + 1) * D] for h in range(H)],
                         axis=0)                                   # (H, S, D)

    scale = 1.0 / (D ** 0.5)      # torch scales q (post in_proj bias)
    q = heads(0) * scale
    k = heads(E)
    v = heads(2 * E)

    # ---- Scores: batched over heads, contraction on last dims (trans-B) ----
    dn_qk = (((2,), (2,)), ((0,), (0,)))
    s = lax.dot_general(q, k, dn_qk, preferred_element_type=f32)   # (H, S, S)

    # ---- Numerically-stable softmax over keys ----
    s = s - jnp.max(s, axis=-1, keepdims=True)
    p = jnp.exp(s)
    denom = jnp.sum(p, axis=-1, keepdims=True)
    inv = pl.reciprocal(denom, approx=True)        # EUP slot (free vs. VALU)
    inv = inv * (2.0 - denom * inv)                # Newton step -> f32 accuracy
    p = p * inv

    # ---- Attend: (H, S, S) @ (H, S, D) -> (H, S, D) ----
    dn_pv = (((2,), (1,)), ((0,), (0,)))
    ctx = lax.dot_general(p, v, dn_pv, preferred_element_type=f32)

    # ---- Recombine heads along lanes, single (S, E) @ (E, E) out-proj ----
    ctx2 = jnp.concatenate([ctx[h] for h in range(H)], axis=-1)    # (S, E)
    out = jnp.dot(ctx2, wo_ref[...].astype(f32),
                  preferred_element_type=f32) + bo_ref[...].astype(f32)

    o_ref[0] = out.astype(o_ref.dtype)


def multihead_self_attention_block(x, params, *, num_heads):
    """LayerNorm + nn.MultiheadAttention(batch_first=True) forward via Pallas."""
    B, S, E = x.shape
    H = num_heads
    assert E % H == 0, "embedding_dim must be divisible by num_heads"
    ln_w, ln_b, in_w, in_b, out_w, out_b = params

    # One-time wrapper-side parameter massaging (all transposes/reshapes live
    # outside the kernel; torch in_proj packing order is [q; k; v]).
    w_in = in_w.T                       # (E, 3E), columns head-major per chunk
    b_in = in_b.reshape(1, 3 * E)
    wo_t = out_w.T                      # (E, E)
    bo = out_b.reshape(1, E)
    ln_w_r = ln_w.reshape(1, E)
    ln_b_r = ln_b.reshape(1, E)

    kernel = functools.partial(_mhsa_kernel, num_heads=H)
    rep = lambda b: (0, 0)              # weights: same block every step

    grid_spec = pltpu.PrefetchScalarGridSpec(
        num_scalar_prefetch=0,
        grid=(B,),
        in_specs=[
            pl.BlockSpec((1, S, E), lambda b: (b, 0, 0)),   # x
            pl.BlockSpec((1, E), rep),                      # ln_w
            pl.BlockSpec((1, E), rep),                      # ln_b
            pl.BlockSpec((E, 3 * E), rep),                  # packed in_proj^T
            pl.BlockSpec((1, 3 * E), rep),                  # in_proj bias
            pl.BlockSpec((E, E), rep),                      # out_proj^T
            pl.BlockSpec((1, E), rep),                      # out_proj bias
        ],
        out_specs=pl.BlockSpec((1, S, E), lambda b: (b, 0, 0)),
    )

    return pl.pallas_call(
        kernel,
        out_shape=jax.ShapeDtypeStruct((B, S, E), x.dtype),
        grid_spec=grid_spec,
        compiler_params=pltpu.CompilerParams(
            dimension_semantics=("parallel",)),
    )(x, ln_w_r, ln_b_r, w_in, b_in, wo_t, bo)


def _reference(x, params, num_heads):
    """Pure-JAX reference matching torch semantics (for verification)."""
    ln_w, ln_b, in_w, in_b, out_w, out_b = [p.astype(jnp.float32) for p in params]
    B, S, E = x.shape
    H = num_heads
    D = E // H
    xf = x.astype(jnp.float32)
    mean = jnp.mean(xf, axis=-1, keepdims=True)
    var = jnp.mean((xf - mean) ** 2, axis=-1, keepdims=True)
    xn = (xf - mean) / jnp.sqrt(var + 1e-5) * ln_w + ln_b
    qkv = jnp.einsum('bse,fe->bsf', xn, in_w) + in_b
    q, k, v = jnp.split(qkv, 3, axis=-1)
    q = q.reshape(B, S, H, D).transpose(0, 2, 1, 3) / jnp.sqrt(D)
    k = k.reshape(B, S, H, D).transpose(0, 2, 1, 3)
    v = v.reshape(B, S, H, D).transpose(0, 2, 1, 3)
    s = jnp.einsum('bhqd,bhkd->bhqk', q, k)
    p = jax.nn.softmax(s, axis=-1)
    a = jnp.einsum('bhqk,bhkd->bhqd', p, v).transpose(0, 2, 1, 3).reshape(B, S, E)
    return jnp.einsum('bse,fe->bsf', a, out_w) + out_b


if __name__ == "__main__":
    # Small shapes consistent with the module: embedding_dim=32, num_heads=4.
    B, S, E, H = 2, 8, 32, 4

    key = jax.random.PRNGKey(0)
    kx, k1, k2, k3, k4, k5, k6 = jax.random.split(key, 7)

    x = jax.random.normal(kx, (B, S, E), dtype=jnp.float32)

    # Torch-shaped parameters (nn.LayerNorm / nn.MultiheadAttention).
    ln_w = 1.0 + 0.1 * jax.random.normal(k5, (E,), jnp.float32)
    ln_b = 0.1 * jax.random.normal(k6, (E,), jnp.float32)
    in_w = jax.random.normal(k1, (3 * E, E), jnp.float32) * 0.05    # in_proj_weight
    in_b = jax.random.normal(k2, (3 * E,), jnp.float32) * 0.05      # in_proj_bias
    out_w = jax.random.normal(k3, (E, E), jnp.float32) * 0.05       # out_proj.weight
    out_b = jax.random.normal(k4, (E,), jnp.float32) * 0.05         # out_proj.bias
    params = (ln_w, ln_b, in_w, in_b, out_w, out_b)

    fwd = jax.jit(functools.partial(multihead_self_attention_block, num_heads=H))
    y = fwd(x, params)
    jax.block_until_ready(y)

    y_ref = _reference(x, params, H)
    assert jnp.allclose(y, y_ref, atol=2e-4, rtol=2e-4), "mismatch vs reference"

    print("KERNEL_OK")
</pallas_src>

<mosaic_0001>
module attributes {stable_mosaic.version = 11 : i64} {
  func.func @_mhsa_kernel(%arg0: i32, %arg1: memref<1x8x32xf32, #tpu.memory_space<vmem>>, %arg2: memref<1x32xf32, #tpu.memory_space<vmem>>, %arg3: memref<1x32xf32, #tpu.memory_space<vmem>>, %arg4: memref<32x96xf32, #tpu.memory_space<vmem>>, %arg5: memref<1x96xf32, #tpu.memory_space<vmem>>, %arg6: memref<32x32xf32, #tpu.memory_space<vmem>>, %arg7: memref<1x32xf32, #tpu.memory_space<vmem>>, %arg8: memref<1x8x32xf32, #tpu.memory_space<vmem>>) attributes {dimension_semantics = [#tpu.dimension_semantics<parallel>], iteration_bounds = array<i64: 2>, scalar_prefetch = 0 : i64, scratch_operands = 0 : i64, tpu.core_type = #tpu.core_type<tc>, window_params = [{transform_indices = @transform_0, window_bounds = array<i64: 1, 8, 32>}, {pipeline_mode = #tpu.pipeline_mode<synchronous>, transform_indices = @transform_1, window_bounds = array<i64: 1, 32>}, {pipeline_mode = #tpu.pipeline_mode<synchronous>, transform_indices = @transform_2, window_bounds = array<i64: 1, 32>}, {pipeline_mode = #tpu.pipeline_mode<synchronous>, transform_indices = @transform_3, window_bounds = array<i64: 32, 96>}, {pipeline_mode = #tpu.pipeline_mode<synchronous>, transform_indices = @transform_4, window_bounds = array<i64: 1, 96>}, {pipeline_mode = #tpu.pipeline_mode<synchronous>, transform_indices = @transform_5, window_bounds = array<i64: 32, 32>}, {pipeline_mode = #tpu.pipeline_mode<synchronous>, transform_indices = @transform_6, window_bounds = array<i64: 1, 32>}, {transform_indices = @transform_7, window_bounds = array<i64: 1, 8, 32>}]} {
    %c0 = arith.constant 0 : index
    %c0_0 = arith.constant 0 : index
    %c0_1 = arith.constant 0 : index
    %0 = vector.load %arg1[%c0, %c0_0, %c0_1] : memref<1x8x32xf32, #tpu.memory_space<vmem>>, vector<1x8x32xf32>
    %1 = vector.shape_cast %0 : vector<1x8x32xf32> to vector<8x32xf32>
    %cst = arith.constant dense<0.000000e+00> : vector<8xf32>
    %2 = vector.multi_reduction <add>, %1, %cst [1] : vector<8x32xf32> to vector<8xf32>
    %3 = vector.shape_cast %2 : vector<8xf32> to vector<8x1xf32>
    %cst_2 = arith.constant 3.200000e+01 : f32
    %4 = vector.broadcast %cst_2 : f32 to vector<8x1xf32>
    %5 = arith.divf %3, %4 : vector<8x1xf32>
    %6 = vector.broadcast %5 : vector<8x1xf32> to vector<8x32xf32>
    %7 = arith.subf %1, %6 : vector<8x32xf32>
    %8 = arith.mulf %7, %7 : vector<8x32xf32>
    %cst_3 = arith.constant dense<0.000000e+00> : vector<8xf32>
    %9 = vector.multi_reduction <add>, %8, %cst_3 [1] : vector<8x32xf32> to vector<8xf32>
    %10 = vector.shape_cast %9 : vector<8xf32> to vector<8x1xf32>
    %cst_4 = arith.constant 3.200000e+01 : f32
    %11 = vector.broadcast %cst_4 : f32 to vector<8x1xf32>
    %12 = arith.divf %10, %11 : vector<8x1xf32>
    %13 = vector.broadcast %5 : vector<8x1xf32> to vector<8x32xf32>
    %14 = arith.subf %1, %13 : vector<8x32xf32>
    %cst_5 = arith.constant 9.99999974E-6 : f32
    %15 = vector.broadcast %cst_5 : f32 to vector<8x1xf32>
    %16 = arith.addf %12, %15 : vector<8x1xf32>
    %17 = math.rsqrt %16 : vector<8x1xf32>
    %18 = vector.broadcast %17 : vector<8x1xf32> to vector<8x32xf32>
    %19 = arith.mulf %14, %18 : vector<8x32xf32>
    %c0_6 = arith.constant 0 : index
    %c0_7 = arith.constant 0 : index
    %20 = vector.load %arg2[%c0_6, %c0_7] : memref<1x32xf32, #tpu.memory_space<vmem>>, vector<1x32xf32>
    %21 = vector.broadcast %20 : vector<1x32xf32> to vector<8x32xf32>
    %22 = arith.mulf %19, %21 : vector<8x32xf32>
    %c0_8 = arith.constant 0 : index
    %c0_9 = arith.constant 0 : index
    %23 = vector.load %arg3[%c0_8, %c0_9] : memref<1x32xf32, #tpu.memory_space<vmem>>, vector<1x32xf32>
    %24 = vector.broadcast %23 : vector<1x32xf32> to vector<8x32xf32>
    %25 = arith.addf %22, %24 : vector<8x32xf32>
    %c0_10 = arith.constant 0 : index
    %c0_11 = arith.constant 0 : index
    %26 = vector.load %arg4[%c0_10, %c0_11] : memref<32x96xf32, #tpu.memory_space<vmem>>, vector<32x96xf32>
    %cst_12 = arith.constant dense<0.000000e+00> : vector<8x96xf32>
    %27 = tpu.matmul %25, %26, %cst_12 {dimension_numbers = #tpu.dot_dimension_numbers<[1], [0], [0], [1], [0, 0, 1, 1], [], []>} : vector<8x32xf32>, vector<32x96xf32>, vector<8x96xf32> -> vector<8x96xf32>
    %c0_13 = arith.constant 0 : index
    %c0_14 = arith.constant 0 : index
    %28 = vector.load %arg5[%c0_13, %c0_14] : memref<1x96xf32, #tpu.memory_space<vmem>>, vector<1x96xf32>
    %29 = vector.broadcast %28 : vector<1x96xf32> to vector<8x96xf32>
    %30 = arith.addf %27, %29 : vector<8x96xf32>
    %31 = vector.extract_strided_slice %30 {offsets = [0, 0], sizes = [8, 32], strides = [1, 1]} : vector<8x96xf32> to vector<8x32xf32>
    %32 = vector.extract_strided_slice %31 {offsets = [0, 0], sizes = [8, 8], strides = [1, 1]} : vector<8x32xf32> to vector<8x8xf32>
    %33 = vector.extract_strided_slice %31 {offsets = [0, 8], sizes = [8, 8], strides = [1, 1]} : vector<8x32xf32> to vector<8x8xf32>
    %34 = vector.extract_strided_slice %31 {offsets = [0, 16], sizes = [8, 8], strides = [1, 1]} : vector<8x32xf32> to vector<8x8xf32>
    %35 = vector.extract_strided_slice %31 {offsets = [0, 24], sizes = [8, 8], strides = [1, 1]} : vector<8x32xf32> to vector<8x8xf32>
    %36 = vector.shape_cast %32 : vector<8x8xf32> to vector<1x8x8xf32>
    %37 = vector.shape_cast %33 : vector<8x8xf32> to vector<1x8x8xf32>
    %38 = vector.shape_cast %34 : vector<8x8xf32> to vector<1x8x8xf32>
    %39 = vector.shape_cast %35 : vector<8x8xf32> to vector<1x8x8xf32>
    %40 = tpu.concatenate %36, %37, %38, %39 in 0 : vector<1x8x8xf32>, vector<1x8x8xf32>, vector<1x8x8xf32>, vector<1x8x8xf32> -> vector<4x8x8xf32>
    %cst_15 = arith.constant 0.353553385 : f32
    %41 = vector.broadcast %cst_15 : f32 to vector<4x8x8xf32>
    %42 = arith.mulf %40, %41 : vector<4x8x8xf32>
    %43 = vector.extract_strided_slice %30 {offsets = [0, 32], sizes = [8, 32], strides = [1, 1]} : vector<8x96xf32> to vector<8x32xf32>
    %44 = vector.extract_strided_slice %43 {offsets = [0, 0], sizes = [8, 8], strides = [1, 1]} : vector<8x32xf32> to vector<8x8xf32>
    %45 = vector.extract_strided_slice %43 {offsets = [0, 8], sizes = [8, 8], strides = [1, 1]} : vector<8x32xf32> to vector<8x8xf32>
    %46 = vector.extract_strided_slice %43 {offsets = [0, 16], sizes = [8, 8], strides = [1, 1]} : vector<8x32xf32> to vector<8x8xf32>
    %47 = vector.extract_strided_slice %43 {offsets = [0, 24], sizes = [8, 8], strides = [1, 1]} : vector<8x32xf32> to vector<8x8xf32>
    %48 = vector.shape_cast %44 : vector<8x8xf32> to vector<1x8x8xf32>
    %49 = vector.shape_cast %45 : vector<8x8xf32> to vector<1x8x8xf32>
    %50 = vector.shape_cast %46 : vector<8x8xf32> to vector<1x8x8xf32>
    %51 = vector.shape_cast %47 : vector<8x8xf32> to vector<1x8x8xf32>
    %52 = tpu.concatenate %48, %49, %50, %51 in 0 : vector<1x8x8xf32>, vector<1x8x8xf32>, vector<1x8x8xf32>, vector<1x8x8xf32> -> vector<4x8x8xf32>
    %53 = vector.extract_strided_slice %30 {offsets = [0, 64], sizes = [8, 32], strides = [1, 1]} : vector<8x96xf32> to vector<8x32xf32>
    %54 = vector.extract_strided_slice %53 {offsets = [0, 0], sizes = [8, 8], strides = [1, 1]} : vector<8x32xf32> to vector<8x8xf32>
    %55 = vector.extract_strided_slice %53 {offsets = [0, 8], sizes = [8, 8], strides = [1, 1]} : vector<8x32xf32> to vector<8x8xf32>
    %56 = vector.extract_strided_slice %53 {offsets = [0, 16], sizes = [8, 8], strides = [1, 1]} : vector<8x32xf32> to vector<8x8xf32>
    %57 = vector.extract_strided_slice %53 {offsets = [0, 24], sizes = [8, 8], strides = [1, 1]} : vector<8x32xf32> to vector<8x8xf32>
    %58 = vector.shape_cast %54 : vector<8x8xf32> to vector<1x8x8xf32>
    %59 = vector.shape_cast %55 : vector<8x8xf32> to vector<1x8x8xf32>
    %60 = vector.shape_cast %56 : vector<8x8xf32> to vector<1x8x8xf32>
    %61 = vector.shape_cast %57 : vector<8x8xf32> to vector<1x8x8xf32>
    %62 = tpu.concatenate %58, %59, %60, %61 in 0 : vector<1x8x8xf32>, vector<1x8x8xf32>, vector<1x8x8xf32>, vector<1x8x8xf32> -> vector<4x8x8xf32>
    %cst_16 = arith.constant dense<0.000000e+00> : vector<4x8x8xf32>
    %63 = tpu.matmul %42, %52, %cst_16 {dimension_numbers = #tpu.dot_dimension_numbers<[2], [2], [1], [1], [0, 0, 0, 1, 1, 1], [0], [0]>} : vector<4x8x8xf32>, vector<4x8x8xf32>, vector<4x8x8xf32> -> vector<4x8x8xf32>
    %cst_17 = arith.constant dense<0xFF800000> : vector<4x8xf32>
    %64 = vector.multi_reduction <maximumf>, %63, %cst_17 [2] : vector<4x8x8xf32> to vector<4x8xf32>
    %65 = vector.shape_cast %64 : vector<4x8xf32> to vector<4x8x1xf32>
    %66 = vector.broadcast %65 : vector<4x8x1xf32> to vector<4x8x8xf32>
    %67 = arith.subf %63, %66 : vector<4x8x8xf32>
    %68 = math.exp %67 : vector<4x8x8xf32>
    %cst_18 = arith.constant dense<0.000000e+00> : vector<4x8xf32>
    %69 = vector.multi_reduction <add>, %68, %cst_18 [2] : vector<4x8x8xf32> to vector<4x8xf32>
    %70 = vector.shape_cast %69 : vector<4x8xf32> to vector<4x8x1xf32>
    %71 = tpu.reciprocal %70 {approx = true} : vector<4x8x1xf32> -> vector<4x8x1xf32>
    %72 = arith.mulf %70, %71 : vector<4x8x1xf32>
    %cst_19 = arith.constant 2.000000e+00 : f32
    %73 = vector.broadcast %cst_19 : f32 to vector<4x8x1xf32>
    %74 = arith.subf %73, %72 : vector<4x8x1xf32>
    %75 = arith.mulf %71, %74 : vector<4x8x1xf32>
    %76 = vector.broadcast %75 : vector<4x8x1xf32> to vector<4x8x8xf32>
    %77 = arith.mulf %68, %76 : vector<4x8x8xf32>
    %cst_20 = arith.constant dense<0.000000e+00> : vector<4x8x8xf32>
    %78 = tpu.matmul %77, %62, %cst_20 {dimension_numbers = #tpu.dot_dimension_numbers<[2], [1], [1], [2], [0, 0, 0, 1, 1, 2], [0], [0]>} : vector<4x8x8xf32>, vector<4x8x8xf32>, vector<4x8x8xf32> -> vector<4x8x8xf32>
    %79 = vector.extract_strided_slice %78 {offsets = [0, 0, 0], sizes = [1, 8, 8], strides = [1, 1, 1]} : vector<4x8x8xf32> to vector<1x8x8xf32>
    %80 = vector.shape_cast %79 : vector<1x8x8xf32> to vector<8x8xf32>
    %81 = vector.extract_strided_slice %78 {offsets = [1, 0, 0], sizes = [1, 8, 8], strides = [1, 1, 1]} : vector<4x8x8xf32> to vector<1x8x8xf32>
    %82 = vector.shape_cast %81 : vector<1x8x8xf32> to vector<8x8xf32>
    %83 = vector.extract_strided_slice %78 {offsets = [2, 0, 0], sizes = [1, 8, 8], strides = [1, 1, 1]} : vector<4x8x8xf32> to vector<1x8x8xf32>
    %84 = vector.shape_cast %83 : vector<1x8x8xf32> to vector<8x8xf32>
    %85 = vector.extract_strided_slice %78 {offsets = [3, 0, 0], sizes = [1, 8, 8], strides = [1, 1, 1]} : vector<4x8x8xf32> to vector<1x8x8xf32>
    %86 = vector.shape_cast %85 : vector<1x8x8xf32> to vector<8x8xf32>
    %87 = tpu.concatenate %80, %82, %84, %86 in 1 : vector<8x8xf32>, vector<8x8xf32>, vector<8x8xf32>, vector<8x8xf32> -> vector<8x32xf32>
    %c0_21 = arith.constant 0 : index
    %c0_22 = arith.constant 0 : index
    %88 = vector.load %arg6[%c0_21, %c0_22] : memref<32x32xf32, #tpu.memory_space<vmem>>, vector<32x32xf32>
    %cst_23 = arith.constant dense<0.000000e+00> : vector<8x32xf32>
    %89 = tpu.matmul %87, %88, %cst_23 {dimension_numbers = #tpu.dot_dimension_numbers<[1], [0], [0], [1], [0, 0, 1, 1], [], []>} : vector<8x32xf32>, vector<32x32xf32>, vector<8x32xf32> -> vector<8x32xf32>
    %c0_24 = arith.constant 0 : index
    %c0_25 = arith.constant 0 : index
    %90 = vector.load %arg7[%c0_24, %c0_25] : memref<1x32xf32, #tpu.memory_space<vmem>>, vector<1x32xf32>
    %91 = vector.broadcast %90 : vector<1x32xf32> to vector<8x32xf32>
    %92 = arith.addf %89, %91 : vector<8x32xf32>
    %c0_26 = arith.constant 0 : index
    %c0_27 = arith.constant 0 : index
    %c0_28 = arith.constant 0 : index
    %93 = vector.load %arg8[%c0_26, %c0_27, %c0_28] : memref<1x8x32xf32, #tpu.memory_space<vmem>>, vector<1x8x32xf32>
    %94 = vector.shape_cast %93 : vector<1x8x32xf32> to vector<8x32xf32>
    %95 = vector.shape_cast %92 : vector<8x32xf32> to vector<1x8x32xf32>
    tpu.vector_store %arg8[%c0_26, %c0_27, %c0_28], %95 {strides = array<i32>} : memref<1x8x32xf32, #tpu.memory_space<vmem>>, vector<1x8x32xf32>,
    return
  }
  func.func @transform_0(%arg0: i32) -> (i32, i32, i32) {
    %c0_i32 = arith.constant 0 : i32
    %c0_i32_0 = arith.constant 0 : i32
    %c0_i32_1 = arith.constant 0 : i32
    return %arg0, %c0_i32, %c0_i32_0 : i32, i32, i32
  }
  func.func @transform_1(%arg0: i32) -> (i32, i32) {
    %c0_i32 = arith.constant 0 : i32
    %c0_i32_0 = arith.constant 0 : i32
    %c0_i32_1 = arith.constant 0 : i32
    return %c0_i32, %c0_i32_0 : i32, i32
  }
  func.func @transform_2(%arg0: i32) -> (i32, i32) {
    %c0_i32 = arith.constant 0 : i32
    %c0_i32_0 = arith.constant 0 : i32
    %c0_i32_1 = arith.constant 0 : i32
    return %c0_i32, %c0_i32_0 : i32, i32
  }
  func.func @transform_3(%arg0: i32) -> (i32, i32) {
    %c0_i32 = arith.constant 0 : i32
    %c0_i32_0 = arith.constant 0 : i32
    %c0_i32_1 = arith.constant 0 : i32
    return %c0_i32, %c0_i32_0 : i32, i32
  }
  func.func @transform_4(%arg0: i32) -> (i32, i32) {
    %c0_i32 = arith.constant 0 : i32
    %c0_i32_0 = arith.constant 0 : i32
    %c0_i32_1 = arith.constant 0 : i32
    return %c0_i32, %c0_i32_0 : i32, i32
  }
  func.func @transform_5(%arg0: i32) -> (i32, i32) {
    %c0_i32 = arith.constant 0 : i32
    %c0_i32_0 = arith.constant 0 : i32
    %c0_i32_1 = arith.constant 0 : i32
    return %c0_i32, %c0_i32_0 : i32, i32
  }
  func.func @transform_6(%arg0: i32) -> (i32, i32) {
    %c0_i32 = arith.constant 0 : i32
    %c0_i32_0 = arith.constant 0 : i32
    %c0_i32_1 = arith.constant 0 : i32
    return %c0_i32, %c0_i32_0 : i32, i32
  }
  func.func @transform_7(%arg0: i32) -> (i32, i32, i32) {
    %c0_i32 = arith.constant 0 : i32
    %c0_i32_0 = arith.constant 0 : i32
    %c0_i32_1 = arith.constant 0 : i32
    return %arg0, %c0_i32, %c0_i32_0 : i32, i32, i32
  }
}

</mosaic_0001>

<llo_original>
// kernel: multihead_self_attention_block.1
$region0: #{multihead_self_attention_block.1}
  #allocation0 [shape = 'u32[]', space=smem, size = 0x4, offset = 0x4, fixed_abs, tag = 'smem constant byte address 0x4 - core index']
  #allocation1 [shape = 'u32[144,128]{1,0:T(1,128)}', space=vmem, size = 0x12000, scoped, tag = 'internal scratch']
  %s0 = inlined_call_operand.vmem [shape: f32[2,8,32], index: 0, kind: input, shape index: {}]
  %s1 = inlined_call_operand.vmem [shape: f32[1,32], index: 1, kind: input, shape index: {}]
  %s2 = inlined_call_operand.vmem [shape: f32[1,32], index: 2, kind: input, shape index: {}]
  %s3 = inlined_call_operand.vmem [shape: f32[32,96], index: 3, kind: input, shape index: {}]
  %s4 = inlined_call_operand.vmem [shape: f32[1,96], index: 4, kind: input, shape index: {}]
  %s5 = inlined_call_operand.vmem [shape: f32[32,32], index: 5, kind: input, shape index: {}]
  %s6 = inlined_call_operand.vmem [shape: f32[1,32], index: 6, kind: input, shape index: {}]
  %s7 = inlined_call_operand.hbm [shape: f32[2,8,32], index: 7, kind: output, shape index: {}]
  %s8 = sld [smem:[#allocation0]]
  $region61: #{multihead_self_attention_block.1} parent=0
    _
  %s10 = ssub.s32 1, %s8
  %s11 = scalar_select 0, %s10, %s8
  $region1: #{multihead_self_attention_block.1} parent=0
    #allocation2 [shape = 'u8[8192]{0}', space=vmem, size = 0x2000, scoped, tag = 'output window, operand 0']
    #allocation3 [shape = 's32[2]{0}', space=sflag, size = 0x8, scoped, tag = 'scoped memory for multihead_self_attention_block.1']
    %12 = vsyncpa [#allocation3], 0
    %s13 = scalar_lea.sflag [#allocation3], 1
    %14 = vsyncpa %s13, 0
    loop: start=0, step=1, limit=4
    $region2: #{multihead_self_attention_block.1} parent=1 // loop_pre_header
      _
    $region3: #{multihead_self_attention_block.1} parent=1 // loop_header
      %s16 = sphi 0, %s20
      %p17 = scmp.ge.s32.totalorder %s16, 4
      %s26 = sphi 0, %s28
      %s29 = sphi 0, %s26
      %s30 = sphi 0, %s29
      %s46 = sphi 0, %s30
      %s50 = sphi 0, %s50
      %s52 = sphi 0, %s50
      %s53 = sphi 0, %s52
      %s67 = sphi 0, %s53
      %s71 = sphi 0, %s71
      %s73 = sphi 0, %s71
      %s74 = sphi 0, %s73
      %s88 = sphi 0, %s74
      %s92 = sphi 0, %s92
      %s94 = sphi 0, %s92
      %s95 = sphi 0, %s94
      %s109 = sphi 0, %s95
      %s113 = sphi 0, %s113
      %s115 = sphi 0, %s113
      %s116 = sphi 0, %s115
      %s130 = sphi 0, %s116
      %s134 = sphi 0, %s134
      %s136 = sphi 0, %s134
      %s137 = sphi 0, %s136
      %s151 = sphi 0, %s137
      %s155 = sphi 0, %s155
      %s157 = sphi 0, %s155
      %s158 = sphi 0, %s157
      %s172 = sphi 0, %s158
      %s178 = sphi 0, %s180
      %s181 = sphi 0, %s178
      %s182 = sphi 0, %s181
      %s198 = sphi 0, %s182
    $region4: #{multihead_self_attention_block.1} parent=1 // loop_header_branch
      %19 = sbr.rel (%p17) target = $region8
    $region5: #{multihead_self_attention_block.1} parent=1 // loop_body
      %s21 = ssub.s32 %s16, 1
      %s22 = ssub.s32 %s16, 2
      %s23 = sadd.s32 %s16, 1
      %s24 = ssub.s32 %s16, %s23
      %p25 = scmp.eq.s32.totalorder %s24, 0
      %s27 = sadd.s32 %s26, 1
      %s28 = scalar_select %p25, %s26, %s27
      %p31 = pneg %p25
      %p32 = scmp.eq.s32.totalorder %s16, 1
      %p33 = por %p31, %p32
      %p34 = scmp.ne.s32.totalorder %s26, %s29
      %p35 = scmp.eq.s32.totalorder %s16, 0
      %p36 = por %p34, %p35
      %p37 = scmp.ne.s32.totalorder %s26, %s29
      %p38 = scmp.eq.s32.totalorder %s21, 1
      %p39 = por %p37, %p38
      %p40 = scmp.ne.s32.totalorder %s29, %s30
      %p41 = scmp.eq.s32.totalorder %s21, 0
      %p42 = por %p40, %p41
      %p43 = scmp.ne.s32.totalorder %s29, %s30
      %p44 = scmp.eq.s32.totalorder %s22, 1
      %p45 = por %p43, %p44
      %p47 = scmp.ne.s32.totalorder %s30, %s46
      %p48 = scmp.eq.s32.totalorder %s22, 0
      %p49 = por %p47, %p48
      %s51 = sadd.s32 %s50, 1
      %p54 = scmp.eq.s32.totalorder %s16, 1
      %p55 = scmp.ne.s32.totalorder %s50, %s52
      %p56 = scmp.eq.s32.totalorder %s16, 0
      %p57 = por %p55, %p56
      %p58 = scmp.ne.s32.totalorder %s50, %s52
      %p59 = scmp.eq.s32.totalorder %s21, 1
      %p60 = por %p58, %p59
      %p61 = scmp.ne.s32.totalorder %s52, %s53
      %p62 = scmp.eq.s32.totalorder %s21, 0
      %p63 = por %p61, %p62
      %p64 = scmp.ne.s32.totalorder %s52, %s53
      %p65 = scmp.eq.s32.totalorder %s22, 1
      %p66 = por %p64, %p65
      %p68 = scmp.ne.s32.totalorder %s53, %s67
      %p69 = scmp.eq.s32.totalorder %s22, 0
      %p70 = por %p68, %p69
      %s72 = sadd.s32 %s71, 1
      %p75 = scmp.eq.s32.totalorder %s16, 1
      %p76 = scmp.ne.s32.totalorder %s71, %s73
      %p77 = scmp.eq.s32.totalorder %s16, 0
      %p78 = por %p76, %p77
      %p79 = scmp.ne.s32.totalorder %s71, %s73
      %p80 = scmp.eq.s32.totalorder %s21, 1
      %p81 = por %p79, %p80
      %p82 = scmp.ne.s32.totalorder %s73, %s74
      %p83 = scmp.eq.s32.totalorder %s21, 0
      %p84 = por %p82, %p83
      %p85 = scmp.ne.s32.totalorder %s73, %s74
      %p86 = scmp.eq.s32.totalorder %s22, 1
      %p87 = por %p85, %p86
      %p89 = scmp.ne.s32.totalorder %s74, %s88
      %p90 = scmp.eq.s32.totalorder %s22, 0
      %p91 = por %p89, %p90
      %s93 = sadd.s32 %s92, 1
      %p96 = scmp.eq.s32.totalorder %s16, 1
      %p97 = scmp.ne.s32.totalorder %s92, %s94
      %p98 = scmp.eq.s32.totalorder %s16, 0
      %p99 = por %p97, %p98
      %p100 = scmp.ne.s32.totalorder %s92, %s94
      %p101 = scmp.eq.s32.totalorder %s21, 1
      %p102 = por %p100, %p101
      %p103 = scmp.ne.s32.totalorder %s94, %s95
      %p104 = scmp.eq.s32.totalorder %s21, 0
      %p105 = por %p103, %p104
      %p106 = scmp.ne.s32.totalorder %s94, %s95
      %p107 = scmp.eq.s32.totalorder %s22, 1
      %p108 = por %p106, %p107
      %p110 = scmp.ne.s32.totalorder %s95, %s109
      %p111 = scmp.eq.s32.totalorder %s22, 0
      %p112 = por %p110, %p111
      %s114 = sadd.s32 %s113, 1
      %p117 = scmp.eq.s32.totalorder %s16, 1
      %p118 = scmp.ne.s32.totalorder %s113, %s115
      %p119 = scmp.eq.s32.totalorder %s16, 0
      %p120 = por %p118, %p119
      %p121 = scmp.ne.s32.totalorder %s113, %s115
      %p122 = scmp.eq.s32.totalorder %s21, 1
      %p123 = por %p121, %p122
      %p124 = scmp.ne.s32.totalorder %s115, %s116
      %p125 = scmp.eq.s32.totalorder %s21, 0
      %p126 = por %p124, %p125
      %p127 = scmp.ne.s32.totalorder %s115, %s116
      %p128 = scmp.eq.s32.totalorder %s22, 1
      %p129 = por %p127, %p128
      %p131 = scmp.ne.s32.totalorder %s116, %s130
      %p132 = scmp.eq.s32.totalorder %s22, 0
      %p133 = por %p131, %p132
      %s135 = sadd.s32 %s134, 1
      %p138 = scmp.eq.s32.totalorder %s16, 1
      %p139 = scmp.ne.s32.totalorder %s134, %s136
      %p140 = scmp.eq.s32.totalorder %s16, 0
      %p141 = por %p139, %p140
      %p142 = scmp.ne.s32.totalorder %s134, %s136
      %p143 = scmp.eq.s32.totalorder %s21, 1
      %p144 = por %p142, %p143
      %p145 = scmp.ne.s32.totalorder %s136, %s137
      %p146 = scmp.eq.s32.totalorder %s21, 0
      %p147 = por %p145, %p146
      %p148 = scmp.ne.s32.totalorder %s136, %s137
      %p149 = scmp.eq.s32.totalorder %s22, 1
      %p150 = por %p148, %p149
      %p152 = scmp.ne.s32.totalorder %s137, %s151
      %p153 = scmp.eq.s32.totalorder %s22, 0
      %p154 = por %p152, %p153
      %s156 = sadd.s32 %s155, 1
      %p159 = scmp.eq.s32.totalorder %s16, 1
      %p160 = scmp.ne.s32.totalorder %s155, %s157
      %p161 = scmp.eq.s32.totalorder %s16, 0
      %p162 = por %p160, %p161
      %p163 = scmp.ne.s32.totalorder %s155, %s157
      %p164 = scmp.eq.s32.totalorder %s21, 1
      %p165 = por %p163, %p164
      %p166 = scmp.ne.s32.totalorder %s157, %s158
      %p167 = scmp.eq.s32.totalorder %s21, 0
      %p168 = por %p166, %p167
      %p169 = scmp.ne.s32.totalorder %s157, %s158
      %p170 = scmp.eq.s32.totalorder %s22, 1
      %p171 = por %p169, %p170
      %p173 = scmp.ne.s32.totalorder %s158, %s172
      %p174 = scmp.eq.s32.totalorder %s22, 0
      %p175 = por %p173, %p174
      %s176 = ssub.s32 %s16, %s23
      %p177 = scmp.eq.s32.totalorder %s176, 0
      %s179 = sadd.s32 %s178, 1
      %s180 = scalar_select %p177, %s178, %s179
      %p183 = pneg %p177
      %p184 = scmp.eq.s32.totalorder %s16, 1
      %p185 = por %p183, %p184
      %p186 = scmp.ne.s32.totalorder %s178, %s181
      %p187 = scmp.eq.s32.totalorder %s16, 0
      %p188 = por %p186, %p187
      %p189 = scmp.ne.s32.totalorder %s178, %s181
      %p190 = scmp.eq.s32.totalorder %s21, 1
      %p191 = por %p189, %p190
      %p192 = scmp.ne.s32.totalorder %s181, %s182
      %p193 = scmp.eq.s32.totalorder %s21, 0
      %p194 = por %p192, %p193
      %p195 = scmp.ne.s32.totalorder %s181, %s182
      %p196 = scmp.eq.s32.totalorder %s22, 1
      %p197 = por %p195, %p196
      %p199 = scmp.ne.s32.totalorder %s182, %s198
      %p200 = scmp.eq.s32.totalorder %s22, 0
      %p201 = por %p199, %p200
      %p202 = scmp.le.s32.totalorder 1, %s16
      %p203 = scmp.lt.s32.totalorder %s16, 3
      %p204 = pnand %p202, %p203
      %p205 = pneg %p204
      // Predicated region
      $region9: #{multihead_self_attention_block.1} parent=5 // pred_check
        _
      $region10: #{multihead_self_attention_block.1} parent=5 // pred_check_branch
        %207 = sbr.rel (%p204) target = $region12
      $region11: #{multihead_self_attention_block.1} parent=5 // pred_region
        %s208 = ssub.s32 %s16, 1
        // Predicated region
        $region13: #{multihead_self_attention_block.1} parent=11 // pred_check
          %p209 = pneg %p63
        $region14: #{multihead_self_attention_block.1} parent=11 // pred_check_branch
          %211 = sbr.rel (%p209) target = $region16
        $region15: #{multihead_self_attention_block.1} parent=11 // pred_region
          _
        $region16: #{multihead_self_attention_block.1} parent=11 // pred_fallthru
          _
        // Predicated region
        $region17: #{multihead_self_attention_block.1} parent=11 // pred_check
          %p212 = pneg %p84
        $region18: #{multihead_self_attention_block.1} parent=11 // pred_check_branch
          %214 = sbr.rel (%p212) target = $region20
        $region19: #{multihead_self_attention_block.1} parent=11 // pred_region
          _
        $region20: #{multihead_self_attention_block.1} parent=11 // pred_fallthru
          _
        // Predicated region
        $region21: #{multihead_self_attention_block.1} parent=11 // pred_check
          %p215 = pneg %p105
        $region22: #{multihead_self_attention_block.1} parent=11 // pred_check_branch
          %217 = sbr.rel (%p215) target = $region24
        $region23: #{multihead_self_attention_block.1} parent=11 // pred_region
          _
        $region24: #{multihead_self_attention_block.1} parent=11 // pred_fallthru
          _
        // Predicated region
        $region25: #{multihead_self_attention_block.1} parent=11 // pred_check
          %p218 = pneg %p126
        $region26: #{multihead_self_attention_block.1} parent=11 // pred_check_branch
          %220 = sbr.rel (%p218) target = $region28
        $region27: #{multihead_self_attention_block.1} parent=11 // pred_region
          _
        $region28: #{multihead_self_attention_block.1} parent=11 // pred_fallthru
          _
        // Predicated region
        $region29: #{multihead_self_attention_block.1} parent=11 // pred_check
          %p221 = pneg %p147
        $region30: #{multihead_self_attention_block.1} parent=11 // pred_check_branch
          %223 = sbr.rel (%p221) target = $region32
        $region31: #{multihead_self_attention_block.1} parent=11 // pred_region
          _
        $region32: #{multihead_self_attention_block.1} parent=11 // pred_fallthru
          _
        // Predicated region
        $region33: #{multihead_self_attention_block.1} parent=11 // pred_check
          %p224 = pneg %p168
        $region34: #{multihead_self_attention_block.1} parent=11 // pred_check_branch
          %226 = sbr.rel (%p224) target = $region36
        $region35: #{multihead_self_attention_block.1} parent=11 // pred_region
          _
        $region36: #{multihead_self_attention_block.1} parent=11 // pred_fallthru
          _
      $region12: #{multihead_self_attention_block.1} parent=5 // pred_fallthru
        _
      %p227 = scmp.lt.s32.totalorder %s16, 2
      // Predicated region
      $region37: #{multihead_self_attention_block.1} parent=5 // pred_check
        %p228 = pneg %p227
      $region38: #{multihead_self_attention_block.1} parent=5 // pred_check_branch
        %230 = sbr.rel (%p228) target = $region40
      $region39: #{multihead_self_attention_block.1} parent=5 // pred_region
        // Predicated region
        $region41: #{multihead_self_attention_block.1} parent=39 // pred_check
          %p231 = pneg %p36
        $region42: #{multihead_self_attention_block.1} parent=39 // pred_check_branch
          %233 = sbr.rel (%p231) target = $region44
        $region43: #{multihead_self_attention_block.1} parent=39 // pred_region
          %p234 = scmp.lt.s32.totalorder %s16, 1
          %s235 = scalar_select %p234, %s16, 1
          %s236 = smul.addr %s235, 8
          %s237 = scalar_lea.vmem %s0, %s236
        $region44: #{multihead_self_attention_block.1} parent=39 // pred_fallthru
          _
      $region40: #{multihead_self_attention_block.1} parent=5 // pred_fallthru
        _
      %p238 = scmp.le.s32.totalorder 1, %s16
      %p239 = scmp.lt.s32.totalorder %s16, 3
      %p240 = pnand %p238, %p239
      %p241 = pneg %p240
      // Predicated region
      $region45: #{multihead_self_attention_block.1} parent=5 // pred_check
        _
      $region46: #{multihead_self_attention_block.1} parent=5 // pred_check_branch
        %243 = sbr.rel (%p240) target = $region48
      $region47: #{multihead_self_attention_block.1} parent=5 // pred_region
        %s244 = ssub.s32 %s16, 1
        %p245 = scmp.lt.s32.totalorder %s21, 1
        %s246 = scalar_select %p245, %s21, 1
        %s247 = smul.addr %s246, 8
        %s248 = scalar_lea.vmem %s0, %s247
        %p249 = pneg %p42
        %p250 = pneg %p39
        %p251 = pneg %p63
        %p252 = pneg %p60
        %p253 = pneg %p84
        %p254 = pneg %p81
        %p255 = pneg %p105
        %p256 = pneg %p102
        %p257 = pneg %p126
        %p258 = pneg %p123
        %p259 = pneg %p147
        %p260 = pneg %p144
        %p261 = pneg %p168
        %p262 = pneg %p165
        %p263 = pneg %p194
        %p264 = pneg %p191
        %s265 = sand.u32 %s181, 1
        %s266 = scalar_lea.sflag [#allocation3], %s265
        %s267 = sand.u32 %s181, 1
        %s268 = smul.addr %s267, 8
        %s269 = scalar_lea.vmem [#allocation2], %s268
        %p270 = scmp.lt.s32.totalorder %s21, 1
        %s271 = scalar_select %p270, %s21, 1
        %s272 = smul.addr %s271, 8
        %s273 = scalar_lea.vmem %s0, %s272
        %v274 = vld [vmem:[%s273] sm:$0xff]
        %vm275 = vcmask 261120
        %v276 = vsel %vm275, %v274, 0.0
        %277 = vadd.xlane.f32.xlu0 %v276
        %v278 = vpop.xlane.xlu0 %277
        %v279 = vrcp.pop 32.0
        %v280 = vmul.f32 %v278, %v279
        %v281 = vsub.f32 %v274, %v280
        %v282 = vmul.f32 %v281, %v281
        %v283 = vsel %vm275, %v282, 0.0
        %284 = vadd.xlane.f32.xlu0 %v283
        %v285 = vpop.xlane.xlu0 %284
        %v286 = vmul.f32 %v285, %v279
        %v287 = vadd.f32 %v286, 1e-05
        %v288 = vrsqrt.pop %v287
        %v289 = vmul.f32 %v281, %v288
        %v290 = vld [vmem:[%s1] sm:$0x1]
        %v292 = vlaneseq
        %v293 = vshrl.u32 %v292, 7
        %v294 = vsub.s32 0, %v293
        %v295 = vrot.slane %v290, %v294
        %v297 = vmul.f32 %v289, %v295
        %v298 = vld [vmem:[%s2] sm:$0x1]
        %v300 = vlaneseq
        %v301 = vshrl.u32 %v300, 7
        %v302 = vsub.s32 0, %v301
        %v303 = vrot.slane %v298, %v302
        %v305 = vadd.f32 %v297, %v303
        %v306 = vld [vmem:[%s3] sm:$0xff]
        %v307 = vld [vmem:[%s3 + $0x8] sm:$0xff]
        %v308 = vld [vmem:[%s3 + $0x10] sm:$0xff]
        %v309 = vld [vmem:[%s3 + $0x18] sm:$0xff]
        %v310 = vld [vmem:[%s4] sm:$0x1]
        %v312 = vlaneseq
        %v313 = vshrl.u32 %v312, 7
        %v314 = vsub.s32 0, %v313
        %v315 = vrot.slane %v310, %v314
        %v318 = vsel %vm275, %v305, 0
        %320 = vmatprep.subr.mxu0 0.0
        %321 = vmatpush1.msra.mxu0 0.0
        %322 = vmatprep.subr.mxu0 0.0
        %323 = vmatpush1.msra.mxu0 0.0
        %324 = vmatprep.subr.mxu0 0.0
        %325 = vmatpush1.msra.mxu0 0.0
        %326 = vmatprep.subr.mxu0 0.0
        %327 = vmatpush1.msra.mxu0 0.0
        %328 = vmatprep.subr.mxu0 0.0
        %329 = vmatpush1.msra.mxu0 0.0
        %330 = vmatprep.subr.mxu0 0.0
        %331 = vmatpush1.msra.mxu0 0.0
        %332 = vmatprep.subr.mxu0 0.0
        %333 = vmatpush1.msra.mxu0 0.0
        %334 = vmatprep.subr.mxu0 0.0
        %335 = vmatpush1.msra.mxu0 0.0
        %336 = vmatprep.subr.mxu0 0.0
        %337 = vmatpush1.msra.mxu0 0.0
        %338 = vmatprep.subr.mxu0 0.0
        %339 = vmatpush1.msra.mxu0 0.0
        %340 = vmatprep.subr.mxu0 0.0
        %341 = vmatpush1.msra.mxu0 0.0
        %342 = vmatprep.subr.mxu0 0.0
        %343 = vmatpush1.msra.mxu0 0.0
        %344 = vmatprep.subr.mxu0 0.0
        %345 = vmatpush1.msra.mxu0 %v309
        %346 = vmatprep.subr.mxu0 0.0
        %347 = vmatpush1.msra.mxu0 %v308
        %348 = vmatprep.subr.mxu0 0.0
        %349 = vmatpush1.msra.mxu0 %v307
        %350 = vmatprep.subr.mxu0 0.0
        %351 = vmatpush1.msra.mxu0 %v306
        %352 = vmatprep.subr.mxu0 0.0
        %353 = vmatpush2.msra.mxu0 0.0
        %354 = vmatprep.subr.mxu0 0.0
        %355 = vmatpush2.msra.mxu0 0.0
        %356 = vmatprep.subr.mxu0 0.0
        %357 = vmatpush2.msra.mxu0 0.0
        %358 = vmatprep.subr.mxu0 0.0
        %359 = vmatpush2.msra.mxu0 0.0
        %360 = vmatprep.subr.mxu0 0.0
        %361 = vmatpush2.msra.mxu0 0.0
        %362 = vmatprep.subr.mxu0 0.0
        %363 = vmatpush2.msra.mxu0 0.0
        %364 = vmatprep.subr.mxu0 0.0
        %365 = vmatpush2.msra.mxu0 0.0
        %366 = vmatprep.subr.mxu0 0.0
        %367 = vmatpush2.msra.mxu0 0.0
        %368 = vmatprep.subr.mxu0 0.0
        %369 = vmatpush2.msra.mxu0 0.0
        %370 = vmatprep.subr.mxu0 0.0
        %371 = vmatpush2.msra.mxu0 0.0
        %372 = vmatprep.subr.mxu0 0.0
        %373 = vmatpush2.msra.mxu0 0.0
        %374 = vmatprep.subr.mxu0 0.0
        %375 = vmatpush2.msra.mxu0 0.0
        %376 = vmatprep.subr.mxu0 0.0
        %377 = vmatpush2.msra.mxu0 0.0
        %378 = vmatprep.subr.mxu0 0.0
        %379 = vmatpush2.msra.mxu0 0.0
        %380 = vmatprep.subr.mxu0 0.0
        %381 = vmatpush2.msra.mxu0 0.0
        %382 = vmatprep.subr.mxu0 0.0
        %383 = vmatpush2.msra.mxu0 0.0
        %384 = vmatprep.mubr.f32.mxu0 0.0
        %385 = vmatmul.mubr.f32.gmra.mxu0 %v318
        %v386 = vpop.f32.mrf.mxu0
        %v387 = vadd.f32 %v315, %v386
        %v388 = vpop.f32.mrf.mxu0
        %389 = vdwg.mxu0
        %391 = vrot.lane.b32.xlu0 %v387, 120
        %v392 = vpop.permute.xlu0 %391
        %394 = vrot.lane.b32.xlu0 %v387, 112
        %v395 = vpop.permute.xlu0 %394
        %397 = vrot.lane.b32.xlu0 %v387, 104
        %v398 = vpop.permute.xlu0 %397
        %v400 = vmul.f32 %v387, 0.35355338
        %v401 = vmul.f32 %v392, 0.35355338
        %v402 = vmul.f32 %v395, 0.35355338
        %v403 = vmul.f32 %v398, 0.35355338
        %404 = vrot.lane.b32.xlu0 %v387, 96
        %v405 = vpop.permute.xlu0 %404
        %vm406 = vcmask 64512
        %v408 = vsel %vm406, %v400, 0
        %v410 = vsel %vm406, %v405, 0
        %412 = vmatprep.subr.mxu0 0.0
        %413 = vmatpush1.xpose.msra.mxu0 0.0
        %414 = vmatprep.subr.mxu0 0.0
        %415 = vmatpush1.xpose.msra.mxu0 0.0
        %416 = vmatprep.subr.mxu0 0.0
        %417 = vmatpush1.xpose.msra.mxu0 0.0
        %418 = vmatprep.subr.mxu0 0.0
        %419 = vmatpush1.xpose.msra.mxu0 0.0
        %420 = vmatprep.subr.mxu0 0.0
        %421 = vmatpush1.xpose.msra.mxu0 0.0
        %422 = vmatprep.subr.mxu0 0.0
        %423 = vmatpush1.xpose.msra.mxu0 0.0
        %424 = vmatprep.subr.mxu0 0.0
        %425 = vmatpush1.xpose.msra.mxu0 0.0
        %426 = vmatprep.subr.mxu0 0.0
        %427 = vmatpush1.xpose.msra.mxu0 0.0
        %428 = vmatprep.subr.mxu0 0.0
        %429 = vmatpush1.xpose.msra.mxu0 0.0
        %430 = vmatprep.subr.mxu0 0.0
        %431 = vmatpush1.xpose.msra.mxu0 0.0
        %432 = vmatprep.subr.mxu0 0.0
        %433 = vmatpush1.xpose.msra.mxu0 0.0
        %434 = vmatprep.subr.mxu0 0.0
        %435 = vmatpush1.xpose.msra.mxu0 0.0
        %436 = vmatprep.subr.mxu0 0.0
        %437 = vmatpush1.xpose.msra.mxu0 0.0
        %438 = vmatprep.subr.mxu0 0.0
        %439 = vmatpush1.xpose.msra.mxu0 0.0
        %440 = vmatprep.subr.mxu0 0.0
        %441 = vmatpush1.xpose.msra.mxu0 0.0
        %442 = vmatprep.subr.mxu0 0.0
        %443 = vmatpush1.xpose.msra.mxu0 %v410
        %444 = vmatprep.subr.mxu0 0.0
        %445 = vmatpush2.xpose.msra.mxu0 0.0
        %446 = vmatprep.subr.mxu0 0.0
        %447 = vmatpush2.xpose.msra.mxu0 0.0
        %448 = vmatprep.subr.mxu0 0.0
        %449 = vmatpush2.xpose.msra.mxu0 0.0
        %450 = vmatprep.subr.mxu0 0.0
        %451 = vmatpush2.xpose.msra.mxu0 0.0
        %452 = vmatprep.subr.mxu0 0.0
        %453 = vmatpush2.xpose.msra.mxu0 0.0
        %454 = vmatprep.subr.mxu0 0.0
        %455 = vmatpush2.xpose.msra.mxu0 0.0
        %456 = vmatprep.subr.mxu0 0.0
        %457 = vmatpush2.xpose.msra.mxu0 0.0
        %458 = vmatprep.subr.mxu0 0.0
        %459 = vmatpush2.xpose.msra.mxu0 0.0
        %460 = vmatprep.subr.mxu0 0.0
        %461 = vmatpush2.xpose.msra.mxu0 0.0
        %462 = vmatprep.subr.mxu0 0.0
        %463 = vmatpush2.xpose.msra.mxu0 0.0
        %464 = vmatprep.subr.mxu0 0.0
        %465 = vmatpush2.xpose.msra.mxu0 0.0
        %466 = vmatprep.subr.mxu0 0.0
        %467 = vmatpush2.xpose.msra.mxu0 0.0
        %468 = vmatprep.subr.mxu0 0.0
        %469 = vmatpush2.xpose.msra.mxu0 0.0
        %470 = vmatprep.subr.mxu0 0.0
        %471 = vmatpush2.xpose.msra.mxu0 0.0
        %472 = vmatprep.subr.mxu0 0.0
        %473 = vmatpush2.xpose.msra.mxu0 0.0
        %474 = vmatprep.subr.mxu0 0.0
        %475 = vmatpush2.xpose.msra.mxu0 0.0
        %476 = vmatprep.mubr.f32.mxu0 0.0
        %477 = vmatmul.mubr.f32.gmra.mxu0 %v408
        %v478 = vpop.f32.mrf.mxu0
        %v479 = vadd.f32 0.0, %v478
        %v480 = vpop.f32.mrf.mxu0
        %481 = vdwg.mxu0
        %482 = vrot.lane.b32.xlu0 %v392, 96
        %v483 = vpop.permute.xlu0 %482
        %v485 = vsel %vm406, %v401, 0
        %v487 = vsel %vm406, %v483, 0
        %489 = vmatprep.subr.mxu0 0.0
        %490 = vmatpush1.xpose.msra.mxu0 0.0
        %491 = vmatprep.subr.mxu0 0.0
        %492 = vmatpush1.xpose.msra.mxu0 0.0
        %493 = vmatprep.subr.mxu0 0.0
        %494 = vmatpush1.xpose.msra.mxu0 0.0
        %495 = vmatprep.subr.mxu0 0.0
        %496 = vmatpush1.xpose.msra.mxu0 0.0
        %497 = vmatprep.subr.mxu0 0.0
        %498 = vmatpush1.xpose.msra.mxu0 0.0
        %499 = vmatprep.subr.mxu0 0.0
        %500 = vmatpush1.xpose.msra.mxu0 0.0
        %501 = vmatprep.subr.mxu0 0.0
        %502 = vmatpush1.xpose.msra.mxu0 0.0
        %503 = vmatprep.subr.mxu0 0.0
        %504 = vmatpush1.xpose.msra.mxu0 0.0
        %505 = vmatprep.subr.mxu0 0.0
        %506 = vmatpush1.xpose.msra.mxu0 0.0
        %507 = vmatprep.subr.mxu0 0.0
        %508 = vmatpush1.xpose.msra.mxu0 0.0
        %509 = vmatprep.subr.mxu0 0.0
        %510 = vmatpush1.xpose.msra.mxu0 0.0
        %511 = vmatprep.subr.mxu0 0.0
        %512 = vmatpush1.xpose.msra.mxu0 0.0
        %513 = vmatprep.subr.mxu0 0.0
        %514 = vmatpush1.xpose.msra.mxu0 0.0
        %515 = vmatprep.subr.mxu0 0.0
        %516 = vmatpush1.xpose.msra.mxu0 0.0
        %517 = vmatprep.subr.mxu0 0.0
        %518 = vmatpush1.xpose.msra.mxu0 0.0
        %519 = vmatprep.subr.mxu0 0.0
        %520 = vmatpush1.xpose.msra.mxu0 %v487
        %521 = vmatprep.subr.mxu0 0.0
        %522 = vmatpush2.xpose.msra.mxu0 0.0
        %523 = vmatprep.subr.mxu0 0.0
        %524 = vmatpush2.xpose.msra.mxu0 0.0
        %525 = vmatprep.subr.mxu0 0.0
        %526 = vmatpush2.xpose.msra.mxu0 0.0
        %527 = vmatprep.subr.mxu0 0.0
        %528 = vmatpush2.xpose.msra.mxu0 0.0
        %529 = vmatprep.subr.mxu0 0.0
        %530 = vmatpush2.xpose.msra.mxu0 0.0
        %531 = vmatprep.subr.mxu0 0.0
        %532 = vmatpush2.xpose.msra.mxu0 0.0
        %533 = vmatprep.subr.mxu0 0.0
        %534 = vmatpush2.xpose.msra.mxu0 0.0
        %535 = vmatprep.subr.mxu0 0.0
        %536 = vmatpush2.xpose.msra.mxu0 0.0
        %537 = vmatprep.subr.mxu0 0.0
        %538 = vmatpush2.xpose.msra.mxu0 0.0
        %539 = vmatprep.subr.mxu0 0.0
        %540 = vmatpush2.xpose.msra.mxu0 0.0
        %541 = vmatprep.subr.mxu0 0.0
        %542 = vmatpush2.xpose.msra.mxu0 0.0
        %543 = vmatprep.subr.mxu0 0.0
        %544 = vmatpush2.xpose.msra.mxu0 0.0
        %545 = vmatprep.subr.mxu0 0.0
        %546 = vmatpush2.xpose.msra.mxu0 0.0
        %547 = vmatprep.subr.mxu0 0.0
        %548 = vmatpush2.xpose.msra.mxu0 0.0
        %549 = vmatprep.subr.mxu0 0.0
        %550 = vmatpush2.xpose.msra.mxu0 0.0
        %551 = vmatprep.subr.mxu0 0.0
        %552 = vmatpush2.xpose.msra.mxu0 0.0
        %553 = vmatprep.mubr.f32.mxu0 0.0
        %554 = vmatmul.mubr.f32.gmra.mxu0 %v485
        %v555 = vpop.f32.mrf.mxu0
        %v556 = vadd.f32 0.0, %v555
        %v557 = vpop.f32.mrf.mxu0
        %558 = vdwg.mxu0
        %559 = vrot.lane.b32.xlu0 %v395, 96
        %v560 = vpop.permute.xlu0 %559
        %v562 = vsel %vm406, %v402, 0
        %v564 = vsel %vm406, %v560, 0
        %566 = vmatprep.subr.mxu0 0.0
        %567 = vmatpush1.xpose.msra.mxu0 0.0
        %568 = vmatprep.subr.mxu0 0.0
        %569 = vmatpush1.xpose.msra.mxu0 0.0
        %570 = vmatprep.subr.mxu0 0.0
        %571 = vmatpush1.xpose.msra.mxu0 0.0
        %572 = vmatprep.subr.mxu0 0.0
        %573 = vmatpush1.xpose.msra.mxu0 0.0
        %574 = vmatprep.subr.mxu0 0.0
        %575 = vmatpush1.xpose.msra.mxu0 0.0
        %576 = vmatprep.subr.mxu0 0.0
        %577 = vmatpush1.xpose.msra.mxu0 0.0
        %578 = vmatprep.subr.mxu0 0.0
        %579 = vmatpush1.xpose.msra.mxu0 0.0
        %580 = vmatprep.subr.mxu0 0.0
        %581 = vmatpush1.xpose.msra.mxu0 0.0
        %582 = vmatprep.subr.mxu0 0.0
        %583 = vmatpush1.xpose.msra.mxu0 0.0
        %584 = vmatprep.subr.mxu0 0.0
        %585 = vmatpush1.xpose.msra.mxu0 0.0
        %586 = vmatprep.subr.mxu0 0.0
        %587 = vmatpush1.xpose.msra.mxu0 0.0
        %588 = vmatprep.subr.mxu0 0.0
        %589 = vmatpush1.xpose.msra.mxu0 0.0
        %590 = vmatprep.subr.mxu0 0.0
        %591 = vmatpush1.xpose.msra.mxu0 0.0
        %592 = vmatprep.subr.mxu0 0.0
        %593 = vmatpush1.xpose.msra.mxu0 0.0
        %594 = vmatprep.subr.mxu0 0.0
        %595 = vmatpush1.xpose.msra.mxu0 0.0
        %596 = vmatprep.subr.mxu0 0.0
        %597 = vmatpush1.xpose.msra.mxu0 %v564
        %598 = vmatprep.subr.mxu0 0.0
        %599 = vmatpush2.xpose.msra.mxu0 0.0
        %600 = vmatprep.subr.mxu0 0.0
        %601 = vmatpush2.xpose.msra.mxu0 0.0
        %602 = vmatprep.subr.mxu0 0.0
        %603 = vmatpush2.xpose.msra.mxu0 0.0
        %604 = vmatprep.subr.mxu0 0.0
        %605 = vmatpush2.xpose.msra.mxu0 0.0
        %606 = vmatprep.subr.mxu0 0.0
        %607 = vmatpush2.xpose.msra.mxu0 0.0
        %608 = vmatprep.subr.mxu0 0.0
        %609 = vmatpush2.xpose.msra.mxu0 0.0
        %610 = vmatprep.subr.mxu0 0.0
        %611 = vmatpush2.xpose.msra.mxu0 0.0
        %612 = vmatprep.subr.mxu0 0.0
        %613 = vmatpush2.xpose.msra.mxu0 0.0
        %614 = vmatprep.subr.mxu0 0.0
        %615 = vmatpush2.xpose.msra.mxu0 0.0
        %616 = vmatprep.subr.mxu0 0.0
        %617 = vmatpush2.xpose.msra.mxu0 0.0
        %618 = vmatprep.subr.mxu0 0.0
        %619 = vmatpush2.xpose.msra.mxu0 0.0
        %620 = vmatprep.subr.mxu0 0.0
        %621 = vmatpush2.xpose.msra.mxu0 0.0
        %622 = vmatprep.subr.mxu0 0.0
        %623 = vmatpush2.xpose.msra.mxu0 0.0
        %624 = vmatprep.subr.mxu0 0.0
        %625 = vmatpush2.xpose.msra.mxu0 0.0
        %626 = vmatprep.subr.mxu0 0.0
        %627 = vmatpush2.xpose.msra.mxu0 0.0
        %628 = vmatprep.subr.mxu0 0.0
        %629 = vmatpush2.xpose.msra.mxu0 0.0
        %630 = vmatprep.mubr.f32.mxu0 0.0
        %631 = vmatmul.mubr.f32.gmra.mxu0 %v562
        %v632 = vpop.f32.mrf.mxu0
        %v633 = vadd.f32 0.0, %v632
        %v634 = vpop.f32.mrf.mxu0
        %635 = vdwg.mxu0
        %636 = vrot.lane.b32.xlu0 %v398, 96
        %v637 = vpop.permute.xlu0 %636
        %v639 = vsel %vm406, %v403, 0
        %v641 = vsel %vm406, %v637, 0
        %643 = vmatprep.subr.mxu0 0.0
        %644 = vmatpush1.xpose.msra.mxu0 0.0
        %645 = vmatprep.subr.mxu0 0.0
        %646 = vmatpush1.xpose.msra.mxu0 0.0
        %647 = vmatprep.subr.mxu0 0.0
        %648 = vmatpush1.xpose.msra.mxu0 0.0
        %649 = vmatprep.subr.mxu0 0.0
        %650 = vmatpush1.xpose.msra.mxu0 0.0
        %651 = vmatprep.subr.mxu0 0.0
        %652 = vmatpush1.xpose.msra.mxu0 0.0
        %653 = vmatprep.subr.mxu0 0.0
        %654 = vmatpush1.xpose.msra.mxu0 0.0
        %655 = vmatprep.subr.mxu0 0.0
        %656 = vmatpush1.xpose.msra.mxu0 0.0
        %657 = vmatprep.subr.mxu0 0.0
        %658 = vmatpush1.xpose.msra.mxu0 0.0
        %659 = vmatprep.subr.mxu0 0.0
        %660 = vmatpush1.xpose.msra.mxu0 0.0
        %661 = vmatprep.subr.mxu0 0.0
        %662 = vmatpush1.xpose.msra.mxu0 0.0
        %663 = vmatprep.subr.mxu0 0.0
        %664 = vmatpush1.xpose.msra.mxu0 0.0
        %665 = vmatprep.subr.mxu0 0.0
        %666 = vmatpush1.xpose.msra.mxu0 0.0
        %667 = vmatprep.subr.mxu0 0.0
        %668 = vmatpush1.xpose.msra.mxu0 0.0
        %669 = vmatprep.subr.mxu0 0.0
        %670 = vmatpush1.xpose.msra.mxu0 0.0
        %671 = vmatprep.subr.mxu0 0.0
        %672 = vmatpush1.xpose.msra.mxu0 0.0
        %673 = vmatprep.subr.mxu0 0.0
        %674 = vmatpush1.xpose.msra.mxu0 %v641
        %675 = vmatprep.subr.mxu0 0.0
        %676 = vmatpush2.xpose.msra.mxu0 0.0
        %677 = vmatprep.subr.mxu0 0.0
        %678 = vmatpush2.xpose.msra.mxu0 0.0
        %679 = vmatprep.subr.mxu0 0.0
        %680 = vmatpush2.xpose.msra.mxu0 0.0
        %681 = vmatprep.subr.mxu0 0.0
        %682 = vmatpush2.xpose.msra.mxu0 0.0
        %683 = vmatprep.subr.mxu0 0.0
        %684 = vmatpush2.xpose.msra.mxu0 0.0
        %685 = vmatprep.subr.mxu0 0.0
        %686 = vmatpush2.xpose.msra.mxu0 0.0
        %687 = vmatprep.subr.mxu0 0.0
        %688 = vmatpush2.xpose.msra.mxu0 0.0
        %689 = vmatprep.subr.mxu0 0.0
        %690 = vmatpush2.xpose.msra.mxu0 0.0
        %691 = vmatprep.subr.mxu0 0.0
        %692 = vmatpush2.xpose.msra.mxu0 0.0
        %693 = vmatprep.subr.mxu0 0.0
        %694 = vmatpush2.xpose.msra.mxu0 0.0
        %695 = vmatprep.subr.mxu0 0.0
        %696 = vmatpush2.xpose.msra.mxu0 0.0
        %697 = vmatprep.subr.mxu0 0.0
        %698 = vmatpush2.xpose.msra.mxu0 0.0
        %699 = vmatprep.subr.mxu0 0.0
        %700 = vmatpush2.xpose.msra.mxu0 0.0
        %701 = vmatprep.subr.mxu0 0.0
        %702 = vmatpush2.xpose.msra.mxu0 0.0
        %703 = vmatprep.subr.mxu0 0.0
        %704 = vmatpush2.xpose.msra.mxu0 0.0
        %705 = vmatprep.subr.mxu0 0.0
        %706 = vmatpush2.xpose.msra.mxu0 0.0
        %707 = vmatprep.mubr.f32.mxu0 0.0
        %708 = vmatmul.mubr.f32.gmra.mxu0 %v639
        %v709 = vpop.f32.mrf.mxu0
        %v710 = vadd.f32 0.0, %v709
        %v711 = vpop.f32.mrf.mxu0
        %712 = vdwg.mxu0
        %v713 = vsel %vm406, %v479, -inf
        %714 = vmax.xlane.f32.xlu0 %v713
        %v715 = vpop.xlane.xlu0 %714
        %v716 = vsel %vm406, %v556, -inf
        %717 = vmax.xlane.f32.xlu0 %v716
        %v718 = vpop.xlane.xlu0 %717
        %v719 = vsel %vm406, %v633, -inf
        %720 = vmax.xlane.f32.xlu0 %v719
        %v721 = vpop.xlane.xlu0 %720
        %v722 = vsel %vm406, %v710, -inf
        %723 = vmax.xlane.f32.xlu0 %v722
        %v724 = vpop.xlane.xlu0 %723
        %v725 = vsub.f32 %v479, %v715
        %v726 = vsub.f32 %v556, %v718
        %v727 = vsub.f32 %v633, %v721
        %v728 = vsub.f32 %v710, %v724
        %v729 = vmul.f32 %v725, 1.442695
        %v730 = vpow.pop %v729
        %v731 = vmul.f32 %v726, 1.442695
        %v732 = vpow.pop %v731
        %v733 = vmul.f32 %v727, 1.442695
        %v734 = vpow.pop %v733
        %v735 = vmul.f32 %v728, 1.442695
        %v736 = vpow.pop %v735
        %v737 = vsel %vm406, %v730, 0.0
        %738 = vadd.xlane.f32.xlu0 %v737
        %v739 = vpop.xlane.xlu0 %738
        %v740 = vsel %vm406, %v732, 0.0
        %741 = vadd.xlane.f32.xlu0 %v740
        %v742 = vpop.xlane.xlu0 %741
        %v743 = vsel %vm406, %v734, 0.0
        %744 = vadd.xlane.f32.xlu0 %v743
        %v745 = vpop.xlane.xlu0 %744
        %v746 = vsel %vm406, %v736, 0.0
        %747 = vadd.xlane.f32.xlu0 %v746
        %v748 = vpop.xlane.xlu0 %747
        %v749 = vrcp.pop %v739
        %v750 = vrcp.pop %v742
        %v751 = vrcp.pop %v745
        %v752 = vrcp.pop %v748
        %v753 = vmul.f32 %v739, %v749
        %v754 = vmul.f32 %v742, %v750
        %v755 = vmul.f32 %v745, %v751
        %v756 = vmul.f32 %v748, %v752
        %v757 = vsub.f32 2.0, %v753
        %v758 = vsub.f32 2.0, %v754
        %v759 = vsub.f32 2.0, %v755
        %v760 = vsub.f32 2.0, %v756
        %v761 = vmul.f32 %v749, %v757
        %v762 = vmul.f32 %v750, %v758
        %v763 = vmul.f32 %v751, %v759
        %v764 = vmul.f32 %v752, %v760
        %v765 = vmul.f32 %v730, %v761
        %v766 = vmul.f32 %v732, %v762
        %v767 = vmul.f32 %v734, %v763
        %v768 = vmul.f32 %v736, %v764
        %769 = vrot.lane.b32.xlu0 %v387, 64
        %v770 = vpop.permute.xlu0 %769
        %v773 = vsel %vm406, %v765, 0
        %775 = vmatprep.subr.mxu0 0.0
        %776 = vmatpush1.msra.mxu0 0.0
        %777 = vmatprep.subr.mxu0 0.0
        %778 = vmatpush1.msra.mxu0 0.0
        %779 = vmatprep.subr.mxu0 0.0
        %780 = vmatpush1.msra.mxu0 0.0
        %781 = vmatprep.subr.mxu0 0.0
        %782 = vmatpush1.msra.mxu0 0.0
        %783 = vmatprep.subr.mxu0 0.0
        %784 = vmatpush1.msra.mxu0 0.0
        %785 = vmatprep.subr.mxu0 0.0
        %786 = vmatpush1.msra.mxu0 0.0
        %787 = vmatprep.subr.mxu0 0.0
        %788 = vmatpush1.msra.mxu0 0.0
        %789 = vmatprep.subr.mxu0 0.0
        %790 = vmatpush1.msra.mxu0 0.0
        %791 = vmatprep.subr.mxu0 0.0
        %792 = vmatpush1.msra.mxu0 0.0
        %793 = vmatprep.subr.mxu0 0.0
        %794 = vmatpush1.msra.mxu0 0.0
        %795 = vmatprep.subr.mxu0 0.0
        %796 = vmatpush1.msra.mxu0 0.0
        %797 = vmatprep.subr.mxu0 0.0
        %798 = vmatpush1.msra.mxu0 0.0
        %799 = vmatprep.subr.mxu0 0.0
        %800 = vmatpush1.msra.mxu0 0.0
        %801 = vmatprep.subr.mxu0 0.0
        %802 = vmatpush1.msra.mxu0 0.0
        %803 = vmatprep.subr.mxu0 0.0
        %804 = vmatpush1.msra.mxu0 0.0
        %805 = vmatprep.subr.mxu0 0.0
        %806 = vmatpush1.msra.mxu0 %v770
        %807 = vmatprep.subr.mxu0 0.0
        %808 = vmatpush2.msra.mxu0 0.0
        %809 = vmatprep.subr.mxu0 0.0
        %810 = vmatpush2.msra.mxu0 0.0
        %811 = vmatprep.subr.mxu0 0.0
        %812 = vmatpush2.msra.mxu0 0.0
        %813 = vmatprep.subr.mxu0 0.0
        %814 = vmatpush2.msra.mxu0 0.0
        %815 = vmatprep.subr.mxu0 0.0
        %816 = vmatpush2.msra.mxu0 0.0
        %817 = vmatprep.subr.mxu0 0.0
        %818 = vmatpush2.msra.mxu0 0.0
        %819 = vmatprep.subr.mxu0 0.0
        %820 = vmatpush2.msra.mxu0 0.0
        %821 = vmatprep.subr.mxu0 0.0
        %822 = vmatpush2.msra.mxu0 0.0
        %823 = vmatprep.subr.mxu0 0.0
        %824 = vmatpush2.msra.mxu0 0.0
        %825 = vmatprep.subr.mxu0 0.0
        %826 = vmatpush2.msra.mxu0 0.0
        %827 = vmatprep.subr.mxu0 0.0
        %828 = vmatpush2.msra.mxu0 0.0
        %829 = vmatprep.subr.mxu0 0.0
        %830 = vmatpush2.msra.mxu0 0.0
        %831 = vmatprep.subr.mxu0 0.0
        %832 = vmatpush2.msra.mxu0 0.0
        %833 = vmatprep.subr.mxu0 0.0
        %834 = vmatpush2.msra.mxu0 0.0
        %835 = vmatprep.subr.mxu0 0.0
        %836 = vmatpush2.msra.mxu0 0.0
        %837 = vmatprep.subr.mxu0 0.0
        %838 = vmatpush2.msra.mxu0 0.0
        %839 = vmatprep.mubr.f32.mxu0 0.0
        %840 = vmatmul.mubr.f32.gmra.mxu0 %v773
        %v841 = vpop.f32.mrf.mxu0
        %v842 = vadd.f32 0.0, %v841
        %v843 = vpop.f32.mrf.mxu0
        %844 = vdwg.mxu0
        %845 = vrot.lane.b32.xlu0 %v392, 64
        %v846 = vpop.permute.xlu0 %845
        %v849 = vsel %vm406, %v766, 0
        %851 = vmatprep.subr.mxu0 0.0
        %852 = vmatpush1.msra.mxu0 0.0
        %853 = vmatprep.subr.mxu0 0.0
        %854 = vmatpush1.msra.mxu0 0.0
        %855 = vmatprep.subr.mxu0 0.0
        %856 = vmatpush1.msra.mxu0 0.0
        %857 = vmatprep.subr.mxu0 0.0
        %858 = vmatpush1.msra.mxu0 0.0
        %859 = vmatprep.subr.mxu0 0.0
        %860 = vmatpush1.msra.mxu0 0.0
        %861 = vmatprep.subr.mxu0 0.0
        %862 = vmatpush1.msra.mxu0 0.0
        %863 = vmatprep.subr.mxu0 0.0
        %864 = vmatpush1.msra.mxu0 0.0
        %865 = vmatprep.subr.mxu0 0.0
        %866 = vmatpush1.msra.mxu0 0.0
        %867 = vmatprep.subr.mxu0 0.0
        %868 = vmatpush1.msra.mxu0 0.0
        %869 = vmatprep.subr.mxu0 0.0
        %870 = vmatpush1.msra.mxu0 0.0
        %871 = vmatprep.subr.mxu0 0.0
        %872 = vmatpush1.msra.mxu0 0.0
        %873 = vmatprep.subr.mxu0 0.0
        %874 = vmatpush1.msra.mxu0 0.0
        %875 = vmatprep.subr.mxu0 0.0
        %876 = vmatpush1.msra.mxu0 0.0
        %877 = vmatprep.subr.mxu0 0.0
        %878 = vmatpush1.msra.mxu0 0.0
        %879 = vmatprep.subr.mxu0 0.0
        %880 = vmatpush1.msra.mxu0 0.0
        %881 = vmatprep.subr.mxu0 0.0
        %882 = vmatpush1.msra.mxu0 %v846
        %883 = vmatprep.subr.mxu0 0.0
        %884 = vmatpush2.msra.mxu0 0.0
        %885 = vmatprep.subr.mxu0 0.0
        %886 = vmatpush2.msra.mxu0 0.0
        %887 = vmatprep.subr.mxu0 0.0
        %888 = vmatpush2.msra.mxu0 0.0
        %889 = vmatprep.subr.mxu0 0.0
        %890 = vmatpush2.msra.mxu0 0.0
        %891 = vmatprep.subr.mxu0 0.0
        %892 = vmatpush2.msra.mxu0 0.0
        %893 = vmatprep.subr.mxu0 0.0
        %894 = vmatpush2.msra.mxu0 0.0
        %895 = vmatprep.subr.mxu0 0.0
        %896 = vmatpush2.msra.mxu0 0.0
        %897 = vmatprep.subr.mxu0 0.0
        %898 = vmatpush2.msra.mxu0 0.0
        %899 = vmatprep.subr.mxu0 0.0
        %900 = vmatpush2.msra.mxu0 0.0
        %901 = vmatprep.subr.mxu0 0.0
        %902 = vmatpush2.msra.mxu0 0.0
        %903 = vmatprep.subr.mxu0 0.0
        %904 = vmatpush2.msra.mxu0 0.0
        %905 = vmatprep.subr.mxu0 0.0
        %906 = vmatpush2.msra.mxu0 0.0
        %907 = vmatprep.subr.mxu0 0.0
        %908 = vmatpush2.msra.mxu0 0.0
        %909 = vmatprep.subr.mxu0 0.0
        %910 = vmatpush2.msra.mxu0 0.0
        %911 = vmatprep.subr.mxu0 0.0
        %912 = vmatpush2.msra.mxu0 0.0
        %913 = vmatprep.subr.mxu0 0.0
        %914 = vmatpush2.msra.mxu0 0.0
        %915 = vmatprep.mubr.f32.mxu0 0.0
        %916 = vmatmul.mubr.f32.gmra.mxu0 %v849
        %v917 = vpop.f32.mrf.mxu0
        %v918 = vadd.f32 0.0, %v917
        %v919 = vpop.f32.mrf.mxu0
        %920 = vdwg.mxu0
        %921 = vrot.lane.b32.xlu0 %v395, 64
        %v922 = vpop.permute.xlu0 %921
        %v925 = vsel %vm406, %v767, 0
        %927 = vmatprep.subr.mxu0 0.0
        %928 = vmatpush1.msra.mxu0 0.0
        %929 = vmatprep.subr.mxu0 0.0
        %930 = vmatpush1.msra.mxu0 0.0
        %931 = vmatprep.subr.mxu0 0.0
        %932 = vmatpush1.msra.mxu0 0.0
        %933 = vmatprep.subr.mxu0 0.0
        %934 = vmatpush1.msra.mxu0 0.0
        %935 = vmatprep.subr.mxu0 0.0
        %936 = vmatpush1.msra.mxu0 0.0
        %937 = vmatprep.subr.mxu0 0.0
        %938 = vmatpush1.msra.mxu0 0.0
        %939 = vmatprep.subr.mxu0 0.0
        %940 = vmatpush1.msra.mxu0 0.0
        %941 = vmatprep.subr.mxu0 0.0
        %942 = vmatpush1.msra.mxu0 0.0
        %943 = vmatprep.subr.mxu0 0.0
        %944 = vmatpush1.msra.mxu0 0.0
        %945 = vmatprep.subr.mxu0 0.0
        %946 = vmatpush1.msra.mxu0 0.0
        %947 = vmatprep.subr.mxu0 0.0
        %948 = vmatpush1.msra.mxu0 0.0
        %949 = vmatprep.subr.mxu0 0.0
        %950 = vmatpush1.msra.mxu0 0.0
        %951 = vmatprep.subr.mxu0 0.0
        %952 = vmatpush1.msra.mxu0 0.0
        %953 = vmatprep.subr.mxu0 0.0
        %954 = vmatpush1.msra.mxu0 0.0
        %955 = vmatprep.subr.mxu0 0.0
        %956 = vmatpush1.msra.mxu0 0.0
        %957 = vmatprep.subr.mxu0 0.0
        %958 = vmatpush1.msra.mxu0 %v922
        %959 = vmatprep.subr.mxu0 0.0
        %960 = vmatpush2.msra.mxu0 0.0
        %961 = vmatprep.subr.mxu0 0.0
        %962 = vmatpush2.msra.mxu0 0.0
        %963 = vmatprep.subr.mxu0 0.0
        %964 = vmatpush2.msra.mxu0 0.0
        %965 = vmatprep.subr.mxu0 0.0
        %966 = vmatpush2.msra.mxu0 0.0
        %967 = vmatprep.subr.mxu0 0.0
        %968 = vmatpush2.msra.mxu0 0.0
        %969 = vmatprep.subr.mxu0 0.0
        %970 = vmatpush2.msra.mxu0 0.0
        %971 = vmatprep.subr.mxu0 0.0
        %972 = vmatpush2.msra.mxu0 0.0
        %973 = vmatprep.subr.mxu0 0.0
        %974 = vmatpush2.msra.mxu0 0.0
        %975 = vmatprep.subr.mxu0 0.0
        %976 = vmatpush2.msra.mxu0 0.0
        %977 = vmatprep.subr.mxu0 0.0
        %978 = vmatpush2.msra.mxu0 0.0
        %979 = vmatprep.subr.mxu0 0.0
        %980 = vmatpush2.msra.mxu0 0.0
        %981 = vmatprep.subr.mxu0 0.0
        %982 = vmatpush2.msra.mxu0 0.0
        %983 = vmatprep.subr.mxu0 0.0
        %984 = vmatpush2.msra.mxu0 0.0
        %985 = vmatprep.subr.mxu0 0.0
        %986 = vmatpush2.msra.mxu0 0.0
        %987 = vmatprep.subr.mxu0 0.0
        %988 = vmatpush2.msra.mxu0 0.0
        %989 = vmatprep.subr.mxu0 0.0
        %990 = vmatpush2.msra.mxu0 0.0
        %991 = vmatprep.mubr.f32.mxu0 0.0
        %992 = vmatmul.mubr.f32.gmra.mxu0 %v925
        %v993 = vpop.f32.mrf.mxu0
        %v994 = vadd.f32 0.0, %v993
        %v995 = vpop.f32.mrf.mxu0
        %996 = vdwg.mxu0
        %997 = vrot.lane.b32.xlu0 %v398, 64
        %v998 = vpop.permute.xlu0 %997
        %v1001 = vsel %vm406, %v768, 0
        %1003 = vmatprep.subr.mxu0 0.0
        %1004 = vmatpush1.msra.mxu0 0.0
        %1005 = vmatprep.subr.mxu0 0.0
        %1006 = vmatpush1.msra.mxu0 0.0
        %1007 = vmatprep.subr.mxu0 0.0
        %1008 = vmatpush1.msra.mxu0 0.0
        %1009 = vmatprep.subr.mxu0 0.0
        %1010 = vmatpush1.msra.mxu0 0.0
        %1011 = vmatprep.subr.mxu0 0.0
        %1012 = vmatpush1.msra.mxu0 0.0
        %1013 = vmatprep.subr.mxu0 0.0
        %1014 = vmatpush1.msra.mxu0 0.0
        %1015 = vmatprep.subr.mxu0 0.0
        %1016 = vmatpush1.msra.mxu0 0.0
        %1017 = vmatprep.subr.mxu0 0.0
        %1018 = vmatpush1.msra.mxu0 0.0
        %1019 = vmatprep.subr.mxu0 0.0
        %1020 = vmatpush1.msra.mxu0 0.0
        %1021 = vmatprep.subr.mxu0 0.0
        %1022 = vmatpush1.msra.mxu0 0.0
        %1023 = vmatprep.subr.mxu0 0.0
        %1024 = vmatpush1.msra.mxu0 0.0
        %1025 = vmatprep.subr.mxu0 0.0
        %1026 = vmatpush1.msra.mxu0 0.0
        %1027 = vmatprep.subr.mxu0 0.0
        %1028 = vmatpush1.msra.mxu0 0.0
        %1029 = vmatprep.subr.mxu0 0.0
        %1030 = vmatpush1.msra.mxu0 0.0
        %1031 = vmatprep.subr.mxu0 0.0
        %1032 = vmatpush1.msra.mxu0 0.0
        %1033 = vmatprep.subr.mxu0 0.0
        %1034 = vmatpush1.msra.mxu0 %v998
        %1035 = vmatprep.subr.mxu0 0.0
        %1036 = vmatpush2.msra.mxu0 0.0
        %1037 = vmatprep.subr.mxu0 0.0
        %1038 = vmatpush2.msra.mxu0 0.0
        %1039 = vmatprep.subr.mxu0 0.0
        %1040 = vmatpush2.msra.mxu0 0.0
        %1041 = vmatprep.subr.mxu0 0.0
        %1042 = vmatpush2.msra.mxu0 0.0
        %1043 = vmatprep.subr.mxu0 0.0
        %1044 = vmatpush2.msra.mxu0 0.0
        %1045 = vmatprep.subr.mxu0 0.0
        %1046 = vmatpush2.msra.mxu0 0.0
        %1047 = vmatprep.subr.mxu0 0.0
        %1048 = vmatpush2.msra.mxu0 0.0
        %1049 = vmatprep.subr.mxu0 0.0
        %1050 = vmatpush2.msra.mxu0 0.0
        %1051 = vmatprep.subr.mxu0 0.0
        %1052 = vmatpush2.msra.mxu0 0.0
        %1053 = vmatprep.subr.mxu0 0.0
        %1054 = vmatpush2.msra.mxu0 0.0
        %1055 = vmatprep.subr.mxu0 0.0
        %1056 = vmatpush2.msra.mxu0 0.0
        %1057 = vmatprep.subr.mxu0 0.0
        %1058 = vmatpush2.msra.mxu0 0.0
        %1059 = vmatprep.subr.mxu0 0.0
        %1060 = vmatpush2.msra.mxu0 0.0
        %1061 = vmatprep.subr.mxu0 0.0
        %1062 = vmatpush2.msra.mxu0 0.0
        %1063 = vmatprep.subr.mxu0 0.0
        %1064 = vmatpush2.msra.mxu0 0.0
        %1065 = vmatprep.subr.mxu0 0.0
        %1066 = vmatpush2.msra.mxu0 0.0
        %1067 = vmatprep.mubr.f32.mxu0 0.0
        %1068 = vmatmul.mubr.f32.gmra.mxu0 %v1001
        %v1069 = vpop.f32.mrf.mxu0
        %v1070 = vadd.f32 0.0, %v1069
        %v1071 = vpop.f32.mrf.mxu0
        %1072 = vdwg.mxu0
        %1074 = vrot.lane.b32.xlu0 %v918, 8
        %v1075 = vpop.permute.xlu0 %1074
        %1078 = vrot.lane.b32.xlu0 %v994, 16
        %v1079 = vpop.permute.xlu0 %1078
        %1082 = vrot.lane.b32.xlu0 %v1070, 24
        %v1083 = vpop.permute.xlu0 %1082
        %v1085 = vsel %vm406, %v842, %v1075
        %vm1086 = vcmask 130048
        %v1087 = vsel %vm1086, %v1085, %v1079
        %vm1088 = vcmask 195584
        %v1089 = vsel %vm1088, %v1087, %v1083
        %v1090 = vld [vmem:[%s5] sm:$0xff]
        %v1091 = vld [vmem:[%s5 + $0x8] sm:$0xff]
        %v1092 = vld [vmem:[%s5 + $0x10] sm:$0xff]
        %v1093 = vld [vmem:[%s5 + $0x18] sm:$0xff]
        %v1094 = vld [vmem:[%s6] sm:$0x1]
        %v1096 = vlaneseq
        %v1097 = vshrl.u32 %v1096, 7
        %v1098 = vsub.s32 0, %v1097
        %v1099 = vrot.slane %v1094, %v1098
        %v1102 = vsel %vm275, %v1089, 0
        %1104 = vmatprep.subr.mxu0 0.0
        %1105 = vmatpush1.msra.mxu0 0.0
        %1106 = vmatprep.subr.mxu0 0.0
        %1107 = vmatpush1.msra.mxu0 0.0
        %1108 = vmatprep.subr.mxu0 0.0
        %1109 = vmatpush1.msra.mxu0 0.0
        %1110 = vmatprep.subr.mxu0 0.0
        %1111 = vmatpush1.msra.mxu0 0.0
        %1112 = vmatprep.subr.mxu0 0.0
        %1113 = vmatpush1.msra.mxu0 0.0
        %1114 = vmatprep.subr.mxu0 0.0
        %1115 = vmatpush1.msra.mxu0 0.0
        %1116 = vmatprep.subr.mxu0 0.0
        %1117 = vmatpush1.msra.mxu0 0.0
        %1118 = vmatprep.subr.mxu0 0.0
        %1119 = vmatpush1.msra.mxu0 0.0
        %1120 = vmatprep.subr.mxu0 0.0
        %1121 = vmatpush1.msra.mxu0 0.0
        %1122 = vmatprep.subr.mxu0 0.0
        %1123 = vmatpush1.msra.mxu0 0.0
        %1124 = vmatprep.subr.mxu0 0.0
        %1125 = vmatpush1.msra.mxu0 0.0
        %1126 = vmatprep.subr.mxu0 0.0
        %1127 = vmatpush1.msra.mxu0 0.0
        %1128 = vmatprep.subr.mxu0 0.0
        %1129 = vmatpush1.msra.mxu0 %v1093
        %1130 = vmatprep.subr.mxu0 0.0
        %1131 = vmatpush1.msra.mxu0 %v1092
        %1132 = vmatprep.subr.mxu0 0.0
        %1133 = vmatpush1.msra.mxu0 %v1091
        %1134 = vmatprep.subr.mxu0 0.0
        %1135 = vmatpush1.msra.mxu0 %v1090
        %1136 = vmatprep.subr.mxu0 0.0
        %1137 = vmatpush2.msra.mxu0 0.0
        %1138 = vmatprep.subr.mxu0 0.0
        %1139 = vmatpush2.msra.mxu0 0.0
        %1140 = vmatprep.subr.mxu0 0.0
        %1141 = vmatpush2.msra.mxu0 0.0
        %1142 = vmatprep.subr.mxu0 0.0
        %1143 = vmatpush2.msra.mxu0 0.0
        %1144 = vmatprep.subr.mxu0 0.0
        %1145 = vmatpush2.msra.mxu0 0.0
        %1146 = vmatprep.subr.mxu0 0.0
        %1147 = vmatpush2.msra.mxu0 0.0
        %1148 = vmatprep.subr.mxu0 0.0
        %1149 = vmatpush2.msra.mxu0 0.0
        %1150 = vmatprep.subr.mxu0 0.0
        %1151 = vmatpush2.msra.mxu0 0.0
        %1152 = vmatprep.subr.mxu0 0.0
        %1153 = vmatpush2.msra.mxu0 0.0
        %1154 = vmatprep.subr.mxu0 0.0
        %1155 = vmatpush2.msra.mxu0 0.0
        %1156 = vmatprep.subr.mxu0 0.0
        %1157 = vmatpush2.msra.mxu0 0.0
        %1158 = vmatprep.subr.mxu0 0.0
        %1159 = vmatpush2.msra.mxu0 0.0
        %1160 = vmatprep.subr.mxu0 0.0
        %1161 = vmatpush2.msra.mxu0 0.0
        %1162 = vmatprep.subr.mxu0 0.0
        %1163 = vmatpush2.msra.mxu0 0.0
        %1164 = vmatprep.subr.mxu0 0.0
        %1165 = vmatpush2.msra.mxu0 0.0
        %1166 = vmatprep.subr.mxu0 0.0
        %1167 = vmatpush2.msra.mxu0 0.0
        %1168 = vmatprep.mubr.f32.mxu0 0.0
        %1169 = vmatmul.mubr.f32.gmra.mxu0 %v1102
        %v1170 = vpop.f32.mrf.mxu0
        %v1171 = vadd.f32 %v1099, %v1170
        %v1172 = vpop.f32.mrf.mxu0
        %1173 = vdwg.mxu0
        %1174 = vst.msk [vmem:[%s269] sm:$0xff] %vm275, %v1171
        %s1175 = sand.u32 %s181, 1
        %s1176 = scalar_lea.sflag [#allocation3], %s1175
        %s1177 = sand.u32 %s181, 1
        %s1178 = smul.addr %s1177, 8
        %s1179 = scalar_lea.vmem [#allocation2], %s1178
        // Predicated region
        $region49: #{multihead_self_attention_block.1} parent=47 // pred_check
          %p1180 = pneg %p191
        $region50: #{multihead_self_attention_block.1} parent=47 // pred_check_branch
          %1182 = sbr.rel (%p1180) target = $region52
        $region51: #{multihead_self_attention_block.1} parent=47 // pred_region
          %s1184 = ssub.s32 128, 128
          %1185 = vsyncadd %s1176, %s1184
          %s1186 = smul.addr %s21, 128
          %s1187 = scalar_lea.hbm %s7, %s1186
          %s1189 = sshll.u32 %s1179, 4
          %s1190 = int_to_ptr.vmem [resolvable:$true] %s1189
          %1192 = dma.vmem_to_hbm [thread:$0]  %s1190, 128, %s1187, %s1176
        $region52: #{multihead_self_attention_block.1} parent=47 // pred_fallthru
          _
      $region48: #{multihead_self_attention_block.1} parent=5 // pred_fallthru
        _
      %p1193 = scmp.le.s32.totalorder 2, %s16
      // Predicated region
      $region53: #{multihead_self_attention_block.1} parent=5 // pred_check
        %p1194 = pneg %p1193
      $region54: #{multihead_self_attention_block.1} parent=5 // pred_check_branch
        %1196 = sbr.rel (%p1194) target = $region56
      $region55: #{multihead_self_attention_block.1} parent=5 // pred_region
        %s1197 = ssub.s32 %s16, 2
        // Predicated region
        $region57: #{multihead_self_attention_block.1} parent=55 // pred_check
          %p1198 = pneg %p197
        $region58: #{multihead_self_attention_block.1} parent=55 // pred_check_branch
          %1200 = sbr.rel (%p1198) target = $region60
        $region59: #{multihead_self_attention_block.1} parent=55 // pred_region
          %s1201 = sand.u32 %s182, 1
          %s1202 = scalar_lea.sflag [#allocation3], %s1201
          %s1203 = sand.u32 %s182, 1
          %s1204 = smul.addr %s1203, 8
          %s1205 = scalar_lea.vmem [#allocation2], %s1204
          %1206 = dma.done %s1202, 128
        $region60: #{multihead_self_attention_block.1} parent=55 // pred_fallthru
          _
      $region56: #{multihead_self_attention_block.1} parent=5 // pred_fallthru
        _
    $region6: #{multihead_self_attention_block.1} parent=1 // loop_footer
      %s20 = sadd.s32 1, %s16
    $region7: #{multihead_self_attention_block.1} parent=1 // loop_footer_branch
      %15 = sbr.rel target = $region3
    $region8: #{multihead_self_attention_block.1} parent=1 // loop_exit
      _
    %1207 = vsyncpa [#allocation3], 1
    %s1208 = scalar_lea.sflag [#allocation3], 1
    %1209 = vsyncpa %s1208, 1

</llo_original>
